<compile_context>
chip_gen: v7x
topology: tpu7x:2x2x1
jax: 0.10.0
libtpu: 0.0.40
codegen_flags: <defaults>
</compile_context>

<pallas_src>
import math

import jax
import jax.numpy as jnp
import numpy as np
from jax.experimental import pallas as pl
from jax.experimental.pallas import tpu as pltpu


def fused_kernel(patches_ref, wblk_ref, w2_ref, hb_ref, out_ref):
    # patches_ref : (win, P*KP)     window-pixel-major conv patches; each per-window
    #                               feature block has a constant-1 column (conv bias).
    # wblk_ref    : (P*KP, P*Cout)  block-diagonal conv weight with bias row folded in.
    # w2_ref      : (P*Cout + O, O) [ W_ih reordered to pooled flatten order ; W_hh^T ].
    # hb_ref      : (2, O)          row 0 = h0, row 1 = b_ih + b_hh.
    # out_ref     : (1, O)
    PC = wblk_ref.shape[1]                                   # P*Cout

    # One MXU push: conv (+bias) for every pooled window and window pixel.
    conv = jnp.dot(patches_ref[...], wblk_ref[...],
                   preferred_element_type=jnp.float32)       # (win, P*Cout)

    # max over the pool window (sublane reduction), then relu -> flattened
    # pooled feature row in PyTorch's channel-major order (lane p*Cout + c).
    pooled = jnp.maximum(jnp.max(conv, axis=0, keepdims=True), 0.0)   # (1, P*Cout)

    # RNN(nonlinearity='relu') single step: two independent small matmuls
    # (no serial MXU dependence chain), then bias + relu.
    acc = (jnp.dot(pooled, w2_ref[0:PC, :], preferred_element_type=jnp.float32)
           + jnp.dot(hb_ref[0:1, :], w2_ref[PC:, :],
                     preferred_element_type=jnp.float32)
           + hb_ref[1:2, :])
    out_ref[...] = jnp.maximum(acc, 0.0)


def model_forward(x, params, *, pool=8, K=3):
    """x: (1, Cin, H, W) float32, NCHW like PyTorch. Returns (1, 1, O)."""
    conv_w, conv_b, w_ih, w_hh, b_ih, b_hh, h0 = params
    _, Cin, H, W = x.shape
    Cout = conv_w.shape[0]
    O = w_ih.shape[0]
    Hp, Wp = H // pool, W // pool
    P = Hp * Wp
    win = pool * pool
    F = Cin * K * K                                   # raw patch features (9)

    # Per-window padded feature width KP: smallest multiple of 128//gcd(P,128)
    # that holds F features + 1 bias slot, so the last dim P*KP is lane-dense.
    blk = 128 // math.gcd(P, 128)
    KP = ((F + 1 + blk - 1) // blk) * blk

    # ---- glue: im2col grouped by pooling window --------------------------
    pad = K // 2
    xp = jnp.pad(x, ((0, 0), (0, 0), (pad, pad), (pad, pad)))
    cols = [xp[0, ci, ky:ky + H, kx:kx + W]
            for ci in range(Cin) for ky in range(K) for kx in range(K)]
    patches = jnp.stack(cols, axis=-1)                # (H, W, F)
    patches = patches.reshape(Hp, pool, Wp, pool, F)
    patches = patches.transpose(0, 2, 1, 3, 4).reshape(P, win, F)

    # window-pixel-major, per-window lane-padded blocks + constant-1 bias column.
    patches_blk = jnp.zeros((win, P, KP), jnp.float32)
    patches_blk = patches_blk.at[:, :, :F].set(patches.transpose(1, 0, 2))
    patches_blk = patches_blk.at[:, :, F].set(1.0)
    patches_blk = patches_blk.reshape(win, P * KP)    # (64, 128) lane-dense

    # ---- glue: weight re-layout ------------------------------------------
    wc = conv_w.transpose(1, 2, 3, 0).reshape(F, Cout)            # (F, Cout)
    wc_pad = (jnp.zeros((KP, Cout), jnp.float32)
              .at[:F, :].set(wc)
              .at[F, :].set(conv_b))                              # bias row folded in
    # block-diagonal conv weight: one wc_pad block per pooled window.
    blocks = []
    for p in range(P):
        left = jnp.zeros((KP, p * Cout), jnp.float32)
        right = jnp.zeros((KP, (P - 1 - p) * Cout), jnp.float32)
        blocks.append(jnp.concatenate([left, wc_pad, right], axis=1))
    w_blk = jnp.concatenate(blocks, axis=0)                       # (P*KP, P*Cout)

    # PyTorch flatten of the pooled map is channel-major: feature f = c*P + p.
    # Our pooled lane index is p*Cout + c, so reorder W_ih accordingly, then
    # pack with W_hh^T into one array (both row offsets are 8-aligned).
    wih_re = w_ih.reshape(O, Cout, P).transpose(2, 1, 0).reshape(P * Cout, O)
    w2 = jnp.concatenate([wih_re, w_hh.T], axis=0)                # (P*Cout + O, O)
    hb = jnp.concatenate([h0.reshape(1, O),
                          (b_ih + b_hh).reshape(1, O)], axis=0)   # (2, O)

    cost = pl.CostEstimate(
        flops=2 * (win * (P * KP) * (P * Cout) + P * Cout * O + O * O),
        transcendentals=0,
        bytes_accessed=4 * (patches_blk.size + w_blk.size + w2.size
                            + hb.size + O))

    out = pl.pallas_call(
        fused_kernel,
        out_shape=jax.ShapeDtypeStruct((1, O), jnp.float32),
        in_specs=[pl.BlockSpec(memory_space=pltpu.MemorySpace.VMEM)] * 4,
        out_specs=pl.BlockSpec(memory_space=pltpu.MemorySpace.VMEM),
        cost_estimate=cost,
    )(patches_blk, w_blk, w2, hb)

    # PyTorch RNN output shape: (seq=1, batch=1, output_size)
    return out.reshape(1, 1, O)


def reference_forward(x, params, *, pool=8):
    """Pure-JAX reference mirroring the PyTorch forward."""
    conv_w, conv_b, w_ih, w_hh, b_ih, b_hh, h0 = params
    y = jax.lax.conv_general_dilated(
        x, conv_w, window_strides=(1, 1), padding=((1, 1), (1, 1)),
        dimension_numbers=('NCHW', 'OIHW', 'NCHW'))
    y = y + conv_b.reshape(1, -1, 1, 1)
    N, C, H, W = y.shape
    y = y.reshape(N, C, H // pool, pool, W // pool, pool).max(axis=(3, 5))
    y = jnp.maximum(y, 0.0)
    f = y.reshape(1, -1)
    h1 = jnp.maximum(f @ w_ih.T + b_ih + h0.reshape(1, -1) @ w_hh.T + b_hh, 0.0)
    return h1.reshape(1, 1, -1)


if __name__ == "__main__":
    # Shapes implied by the module: img 16x16, img_depth 1, maxpool 8,
    # conv out channels 10 (fixed by the module), output_size 32.
    H = W = 16
    Cin = 1
    Cout = 10
    K = 3
    pool = 8
    O = 32
    F = Cout * (H // pool) * (W // pool)   # 10 * 2 * 2 = 40 (RNN input size)

    key = jax.random.PRNGKey(0)
    ks = jax.random.split(key, 8)

    def u(k, shape, bound):
        return jax.random.uniform(k, shape, jnp.float32, -bound, bound)

    x = jax.random.normal(ks[0], (1, Cin, H, W), jnp.float32)
    cb = 1.0 / math.sqrt(Cin * K * K)
    rb = 1.0 / math.sqrt(O)
    conv_w = u(ks[1], (Cout, Cin, K, K), cb)
    conv_b = u(ks[2], (Cout,), cb)
    w_ih = u(ks[3], (O, F), rb)
    w_hh = u(ks[4], (O, O), rb)
    b_ih = u(ks[5], (O,), rb)
    b_hh = u(ks[6], (O,), rb)
    h0_zero = jnp.zeros((1, 1, O), jnp.float32)            # module's initial self.h0
    h0_nz = jax.random.normal(ks[7], (1, 1, O), jnp.float32)  # later-step state

    fwd = jax.jit(model_forward, static_argnames=("pool", "K"))

    # Case 1: initial state (h0 = 0), as in the module's __init__.
    params0 = (conv_w, conv_b, w_ih, w_hh, b_ih, b_hh, h0_zero)
    out0 = jax.block_until_ready(fwd(x, params0, pool=pool, K=K))
    ref0 = reference_forward(x, params0, pool=pool)
    assert out0.shape == (1, 1, O), out0.shape
    np.testing.assert_allclose(np.asarray(out0), np.asarray(ref0),
                               rtol=1e-4, atol=1e-4)

    # Case 2: nonzero hidden state (exercises the recurrent matmul path).
    params1 = (conv_w, conv_b, w_ih, w_hh, b_ih, b_hh, h0_nz)
    out1 = jax.block_until_ready(fwd(x, params1, pool=pool, K=K))
    ref1 = reference_forward(x, params1, pool=pool)
    np.testing.assert_allclose(np.asarray(out1), np.asarray(ref1),
                               rtol=1e-4, atol=1e-4)

    print("KERNEL_OK")
</pallas_src>

<mosaic_0001>
module attributes {stable_mosaic.version = 11 : i64} {
  func.func @fused_kernel(%arg0: memref<64x128xf32, #tpu.memory_space<vmem>>, %arg1: memref<128x40xf32, #tpu.memory_space<vmem>>, %arg2: memref<72x32xf32, #tpu.memory_space<vmem>>, %arg3: memref<2x32xf32, #tpu.memory_space<vmem>>, %arg4: memref<1x32xf32, #tpu.memory_space<vmem>>) attributes {dimension_semantics = [], scalar_prefetch = 0 : i64, scratch_operands = 0 : i64, tpu.core_type = #tpu.core_type<tc>} {
    %c0 = arith.constant 0 : index
    %c0_0 = arith.constant 0 : index
    %0 = vector.load %arg0[%c0, %c0_0] : memref<64x128xf32, #tpu.memory_space<vmem>>, vector<64x128xf32>
    %c0_1 = arith.constant 0 : index
    %c0_2 = arith.constant 0 : index
    %1 = vector.load %arg1[%c0_1, %c0_2] : memref<128x40xf32, #tpu.memory_space<vmem>>, vector<128x40xf32>
    %cst = arith.constant dense<0.000000e+00> : vector<64x40xf32>
    %2 = tpu.matmul %0, %1, %cst {dimension_numbers = #tpu.dot_dimension_numbers<[1], [0], [0], [1], [0, 0, 1, 1], [], []>} : vector<64x128xf32>, vector<128x40xf32>, vector<64x40xf32> -> vector<64x40xf32>
    %cst_3 = arith.constant dense<0xFF800000> : vector<40xf32>
    %3 = vector.multi_reduction <maximumf>, %2, %cst_3 [0] : vector<64x40xf32> to vector<40xf32>
    %4 = vector.shape_cast %3 : vector<40xf32> to vector<1x40xf32>
    %cst_4 = arith.constant 0.000000e+00 : f32
    %5 = vector.broadcast %cst_4 : f32 to vector<1x40xf32>
    %6 = arith.maximumf %4, %5 : vector<1x40xf32>
    %c0_5 = arith.constant 0 : index
    %c0_6 = arith.constant 0 : index
    %7 = vector.load %arg2[%c0_5, %c0_6] : memref<72x32xf32, #tpu.memory_space<vmem>>, vector<40x32xf32>
    %cst_7 = arith.constant dense<0.000000e+00> : vector<1x32xf32>
    %8 = tpu.matmul %6, %7, %cst_7 {dimension_numbers = #tpu.dot_dimension_numbers<[1], [0], [0], [1], [0, 0, 1, 1], [], []>} : vector<1x40xf32>, vector<40x32xf32>, vector<1x32xf32> -> vector<1x32xf32>
    %c0_8 = arith.constant 0 : index
    %c0_9 = arith.constant 0 : index
    %9 = vector.load %arg3[%c0_8, %c0_9] : memref<2x32xf32, #tpu.memory_space<vmem>>, vector<1x32xf32>
    %c40 = arith.constant 40 : index
    %c0_10 = arith.constant 0 : index
    %10 = vector.load %arg2[%c40, %c0_10] : memref<72x32xf32, #tpu.memory_space<vmem>>, vector<32x32xf32>
    %cst_11 = arith.constant dense<0.000000e+00> : vector<1x32xf32>
    %11 = tpu.matmul %9, %10, %cst_11 {dimension_numbers = #tpu.dot_dimension_numbers<[1], [0], [0], [1], [0, 0, 1, 1], [], []>} : vector<1x32xf32>, vector<32x32xf32>, vector<1x32xf32> -> vector<1x32xf32>
    %12 = arith.addf %8, %11 : vector<1x32xf32>
    %c1 = arith.constant 1 : index
    %c0_12 = arith.constant 0 : index
    %13 = vector.load %arg3[%c1, %c0_12] : memref<2x32xf32, #tpu.memory_space<vmem>>, vector<1x32xf32>
    %14 = arith.addf %12, %13 : vector<1x32xf32>
    %cst_13 = arith.constant 0.000000e+00 : f32
    %15 = vector.broadcast %cst_13 : f32 to vector<1x32xf32>
    %16 = arith.maximumf %14, %15 : vector<1x32xf32>
    %c0_14 = arith.constant 0 : index
    %c0_15 = arith.constant 0 : index
    %17 = vector.load %arg4[%c0_14, %c0_15] : memref<1x32xf32, #tpu.memory_space<vmem>>, vector<1x32xf32>
    tpu.vector_store %arg4[%c0_14, %c0_15], %16 {strides = array<i32>} : memref<1x32xf32, #tpu.memory_space<vmem>>, vector<1x32xf32>,
    return
  }
}

</mosaic_0001>

<llo_original>
// kernel: model_forward.1
$region0: #{model_forward.1}
  #allocation0 [shape = 'u32[]', space=smem, size = 0x4, offset = 0x4, fixed_abs, tag = 'smem constant byte address 0x4 - core index']
  #allocation1 [shape = 'u32[144,128]{1,0:T(1,128)}', space=vmem, size = 0x12000, scoped, tag = 'internal scratch']
  %s0 = inlined_call_operand.vmem [shape: f32[64,128], index: 0, kind: input, shape index: {}]
  %s1 = inlined_call_operand.vmem [shape: f32[128,40], index: 1, kind: input, shape index: {}]
  %s2 = inlined_call_operand.vmem [shape: f32[72,32], index: 2, kind: input, shape index: {}]
  %s3 = inlined_call_operand.vmem [shape: f32[2,32], index: 3, kind: input, shape index: {}]
  %s4 = inlined_call_operand.hbm [shape: f32[1,32], index: 4, kind: output, shape index: {}]
  %s5 = sld [smem:[#allocation0]]
  $region26: #{model_forward.1} parent=0
    _
  %s7 = ssub.s32 1, %s5
  %s8 = scalar_select 0, %s7, %s5
  $region1: #{model_forward.1} parent=0
    #allocation2 [shape = 'u8[512]{0}', space=vmem, size = 0x400, scoped, tag = 'output window, operand 0, single buffered']
    #allocation3 [shape = 's32[1]{0}', space=sflag, size = 0x4, scoped, tag = 'scoped memory for model_forward.1']
    %9 = vsyncpa [#allocation3], 0
    // Predicated region
    $region2: #{model_forward.1} parent=1 // pred_check
      _
    $region3: #{model_forward.1} parent=1 // pred_check_branch
      %11 = sbr.rel (0) target = $region5
    $region4: #{model_forward.1} parent=1 // pred_region
      _
    $region5: #{model_forward.1} parent=1 // pred_fallthru
      _
    // Predicated region
    $region6: #{model_forward.1} parent=1 // pred_check
      _
    $region7: #{model_forward.1} parent=1 // pred_check_branch
      %13 = sbr.rel (0) target = $region9
    $region8: #{model_forward.1} parent=1 // pred_region
      _
    $region9: #{model_forward.1} parent=1 // pred_fallthru
      _
    // Predicated region
    $region10: #{model_forward.1} parent=1 // pred_check
      _
    $region11: #{model_forward.1} parent=1 // pred_check_branch
      %15 = sbr.rel (0) target = $region13
    $region12: #{model_forward.1} parent=1 // pred_region
      _
    $region13: #{model_forward.1} parent=1 // pred_fallthru
      _
    // Predicated region
    $region14: #{model_forward.1} parent=1 // pred_check
      _
    $region15: #{model_forward.1} parent=1 // pred_check_branch
      %17 = sbr.rel (0) target = $region17
    $region16: #{model_forward.1} parent=1 // pred_region
      _
    $region17: #{model_forward.1} parent=1 // pred_fallthru
      _
    %v18 = vld [vmem:[%s0] sm:$0xff]
    %v19 = vld [vmem:[%s0 + $0x8] sm:$0xff]
    %v20 = vld [vmem:[%s0 + $0x10] sm:$0xff]
    %v21 = vld [vmem:[%s0 + $0x18] sm:$0xff]
    %v22 = vld [vmem:[%s0 + $0x20] sm:$0xff]
    %v23 = vld [vmem:[%s0 + $0x28] sm:$0xff]
    %v24 = vld [vmem:[%s0 + $0x30] sm:$0xff]
    %v25 = vld [vmem:[%s0 + $0x38] sm:$0xff]
    %v26 = vld [vmem:[%s1] sm:$0xff]
    %v27 = vld [vmem:[%s1 + $0x8] sm:$0xff]
    %v28 = vld [vmem:[%s1 + $0x10] sm:$0xff]
    %v29 = vld [vmem:[%s1 + $0x18] sm:$0xff]
    %v30 = vld [vmem:[%s1 + $0x20] sm:$0xff]
    %v31 = vld [vmem:[%s1 + $0x28] sm:$0xff]
    %v32 = vld [vmem:[%s1 + $0x30] sm:$0xff]
    %v33 = vld [vmem:[%s1 + $0x38] sm:$0xff]
    %v34 = vld [vmem:[%s1 + $0x40] sm:$0xff]
    %v35 = vld [vmem:[%s1 + $0x48] sm:$0xff]
    %v36 = vld [vmem:[%s1 + $0x50] sm:$0xff]
    %v37 = vld [vmem:[%s1 + $0x58] sm:$0xff]
    %v38 = vld [vmem:[%s1 + $0x60] sm:$0xff]
    %v39 = vld [vmem:[%s1 + $0x68] sm:$0xff]
    %v40 = vld [vmem:[%s1 + $0x70] sm:$0xff]
    %v41 = vld [vmem:[%s1 + $0x78] sm:$0xff]
    %42 = vmatprep.subr.mxu0 0.0
    %43 = vmatpush1.msra.mxu0 %v26
    %44 = vmatprep.subr.mxu0 0.0
    %45 = vmatpush1.msra.mxu0 %v27
    %46 = vmatprep.subr.mxu0 0.0
    %47 = vmatpush1.msra.mxu0 %v28
    %48 = vmatprep.subr.mxu0 0.0
    %49 = vmatpush1.msra.mxu0 %v29
    %50 = vmatprep.subr.mxu0 0.0
    %51 = vmatpush1.msra.mxu0 %v30
    %52 = vmatprep.subr.mxu0 0.0
    %53 = vmatpush1.msra.mxu0 %v31
    %54 = vmatprep.subr.mxu0 0.0
    %55 = vmatpush1.msra.mxu0 %v32
    %56 = vmatprep.subr.mxu0 0.0
    %57 = vmatpush1.msra.mxu0 %v33
    %58 = vmatprep.subr.mxu0 0.0
    %59 = vmatpush1.msra.mxu0 %v34
    %60 = vmatprep.subr.mxu0 0.0
    %61 = vmatpush1.msra.mxu0 %v35
    %62 = vmatprep.subr.mxu0 0.0
    %63 = vmatpush1.msra.mxu0 %v36
    %64 = vmatprep.subr.mxu0 0.0
    %65 = vmatpush1.msra.mxu0 %v37
    %66 = vmatprep.subr.mxu0 0.0
    %67 = vmatpush1.msra.mxu0 %v38
    %68 = vmatprep.subr.mxu0 0.0
    %69 = vmatpush1.msra.mxu0 %v39
    %70 = vmatprep.subr.mxu0 0.0
    %71 = vmatpush1.msra.mxu0 %v40
    %72 = vmatprep.subr.mxu0 0.0
    %73 = vmatpush1.msra.mxu0 %v41
    %74 = vmatprep.subr.mxu0 0.0
    %75 = vmatpush1.msra.mxu0 0.0
    %76 = vmatprep.subr.mxu0 0.0
    %77 = vmatpush1.msra.mxu0 0.0
    %78 = vmatprep.subr.mxu0 0.0
    %79 = vmatpush1.msra.mxu0 0.0
    %80 = vmatprep.subr.mxu0 0.0
    %81 = vmatpush1.msra.mxu0 0.0
    %82 = vmatprep.subr.mxu0 0.0
    %83 = vmatpush1.msra.mxu0 0.0
    %84 = vmatprep.subr.mxu0 0.0
    %85 = vmatpush1.msra.mxu0 0.0
    %86 = vmatprep.subr.mxu0 0.0
    %87 = vmatpush1.msra.mxu0 0.0
    %88 = vmatprep.subr.mxu0 0.0
    %89 = vmatpush1.msra.mxu0 0.0
    %90 = vmatprep.subr.mxu0 0.0
    %91 = vmatpush1.msra.mxu0 0.0
    %92 = vmatprep.subr.mxu0 0.0
    %93 = vmatpush1.msra.mxu0 0.0
    %94 = vmatprep.subr.mxu0 0.0
    %95 = vmatpush1.msra.mxu0 0.0
    %96 = vmatprep.subr.mxu0 0.0
    %97 = vmatpush1.msra.mxu0 0.0
    %98 = vmatprep.subr.mxu0 0.0
    %99 = vmatpush1.msra.mxu0 0.0
    %100 = vmatprep.subr.mxu0 0.0
    %101 = vmatpush1.msra.mxu0 0.0
    %102 = vmatprep.subr.mxu0 0.0
    %103 = vmatpush1.msra.mxu0 0.0
    %104 = vmatprep.subr.mxu0 0.0
    %105 = vmatpush1.msra.mxu0 0.0
    %106 = vmatprep.mubr.f32.mxu0 0.0
    %107 = vmatmul.mubr.f32.gmra.mrb[0].mxu0 %v18
    %v108 = vpop.f32.mrb[0].mxu0
    %v109 = vadd.f32 0.0, %v108
    %v110 = vpop.f32.mrb[0].mxu0
    %111 = vmatprep.mubr.f32.mxu0 0.0
    %112 = vmatmul.mubr.f32.gmra.mrb[0].mxu0 %v19
    %v113 = vpop.f32.mrb[0].mxu0
    %v114 = vadd.f32 0.0, %v113
    %v115 = vpop.f32.mrb[0].mxu0
    %116 = vmatprep.mubr.f32.mxu0 0.0
    %117 = vmatmul.mubr.f32.gmra.mrb[0].mxu0 %v20
    %v118 = vpop.f32.mrb[0].mxu0
    %v119 = vadd.f32 0.0, %v118
    %v120 = vpop.f32.mrb[0].mxu0
    %121 = vmatprep.mubr.f32.mxu0 0.0
    %122 = vmatmul.mubr.f32.gmra.mrb[0].mxu0 %v21
    %v123 = vpop.f32.mrb[0].mxu0
    %v124 = vadd.f32 0.0, %v123
    %v125 = vpop.f32.mrb[0].mxu0
    %126 = vmatprep.mubr.f32.mxu0 0.0
    %127 = vmatmul.mubr.f32.gmra.mrb[0].mxu0 %v22
    %v128 = vpop.f32.mrb[0].mxu0
    %v129 = vadd.f32 0.0, %v128
    %v130 = vpop.f32.mrb[0].mxu0
    %131 = vmatprep.mubr.f32.mxu0 0.0
    %132 = vmatmul.mubr.f32.gmra.mrb[0].mxu0 %v23
    %v133 = vpop.f32.mrb[0].mxu0
    %v134 = vadd.f32 0.0, %v133
    %v135 = vpop.f32.mrb[0].mxu0
    %136 = vmatprep.mubr.f32.mxu0 0.0
    %137 = vmatmul.mubr.f32.gmra.mrb[0].mxu0 %v24
    %v138 = vpop.f32.mrb[0].mxu0
    %v139 = vadd.f32 0.0, %v138
    %v140 = vpop.f32.mrb[0].mxu0
    %141 = vmatprep.mubr.f32.mxu0 0.0
    %142 = vmatmul.mubr.f32.gmra.mrb[0].mxu0 %v25
    %v143 = vpop.f32.mrb[0].mxu0
    %v144 = vadd.f32 0.0, %v143
    %v145 = vpop.f32.mrb[0].mxu0
    %146 = vdwg.mxu0
    %vm147 = vcmask 326656
    %v148 = vsel %vm147, %v109, -inf
    %v149 = vsel %vm147, %v114, -inf
    %v150 = vsel %vm147, %v119, -inf
    %v151 = vsel %vm147, %v124, -inf
    %v152 = vsel %vm147, %v129, -inf
    %v153 = vmax.f32 %v148, %v152
    %v154 = vsel %vm147, %v134, -inf
    %v155 = vmax.f32 %v149, %v154
    %v156 = vsel %vm147, %v139, -inf
    %v157 = vmax.f32 %v150, %v156
    %v158 = vsel %vm147, %v144, -inf
    %v159 = vmax.f32 %v151, %v158
    %v160 = vmax.f32 %v153, %v155
    %v161 = vmax.f32 %v157, %v159
    %v162 = vmax.f32 %v160, %v161
    %v163 = vrot.slane %v162, 4
    %v164 = vmax.f32 %v162, %v163
    %v165 = vrot.slane %v164, 2
    %v166 = vmax.f32 %v164, %v165
    %v167 = vrot.slane %v166, 1
    %v168 = vmax.f32 %v166, %v167
    %v169 = vmax.f32 %v168, 0.0
    %v170 = vld [vmem:[%s2] sm:$0xff]
    %v171 = vld [vmem:[%s2 + $0x8] sm:$0xff]
    %v172 = vld [vmem:[%s2 + $0x10] sm:$0xff]
    %v173 = vld [vmem:[%s2 + $0x18] sm:$0xff]
    %v174 = vld [vmem:[%s2 + $0x20] sm:$0xff]
    %v175 = vld [vmem:[%s3] sm:$0x1]
    %v176 = vld [vmem:[%s2 + $0x28] sm:$0xff]
    %v177 = vld [vmem:[%s2 + $0x30] sm:$0xff]
    %v178 = vld [vmem:[%s2 + $0x38] sm:$0xff]
    %v179 = vld [vmem:[%s2 + $0x40] sm:$0xff]
    %vm180 = vcmask 261120
    %v182 = vsel %vm180, %v175, 0
    %184 = vmatprep.subr.mxu0 0.0
    %185 = vmatpush1.msra.mxu0 %v176
    %186 = vmatprep.subr.mxu0 0.0
    %187 = vmatpush1.msra.mxu0 %v177
    %188 = vmatprep.subr.mxu0 0.0
    %189 = vmatpush1.msra.mxu0 %v178
    %190 = vmatprep.subr.mxu0 0.0
    %191 = vmatpush1.msra.mxu0 %v179
    %192 = vmatprep.subr.mxu0 0.0
    %193 = vmatpush1.msra.mxu0 0.0
    %194 = vmatprep.subr.mxu0 0.0
    %195 = vmatpush1.msra.mxu0 0.0
    %196 = vmatprep.subr.mxu0 0.0
    %197 = vmatpush1.msra.mxu0 0.0
    %198 = vmatprep.subr.mxu0 0.0
    %199 = vmatpush1.msra.mxu0 0.0
    %200 = vmatprep.subr.mxu0 0.0
    %201 = vmatpush1.msra.mxu0 0.0
    %202 = vmatprep.subr.mxu0 0.0
    %203 = vmatpush1.msra.mxu0 0.0
    %204 = vmatprep.subr.mxu0 0.0
    %205 = vmatpush1.msra.mxu0 0.0
    %206 = vmatprep.subr.mxu0 0.0
    %207 = vmatpush1.msra.mxu0 0.0
    %208 = vmatprep.subr.mxu0 0.0
    %209 = vmatpush1.msra.mxu0 0.0
    %210 = vmatprep.subr.mxu0 0.0
    %211 = vmatpush1.msra.mxu0 0.0
    %212 = vmatprep.subr.mxu0 0.0
    %213 = vmatpush1.msra.mxu0 0.0
    %214 = vmatprep.subr.mxu0 0.0
    %215 = vmatpush1.msra.mxu0 0.0
    %216 = vmatprep.subr.mxu0 0.0
    %217 = vmatpush1.msra.mxu0 0.0
    %218 = vmatprep.subr.mxu0 0.0
    %219 = vmatpush1.msra.mxu0 0.0
    %220 = vmatprep.subr.mxu0 0.0
    %221 = vmatpush1.msra.mxu0 0.0
    %222 = vmatprep.subr.mxu0 0.0
    %223 = vmatpush1.msra.mxu0 0.0
    %224 = vmatprep.subr.mxu0 0.0
    %225 = vmatpush1.msra.mxu0 0.0
    %226 = vmatprep.subr.mxu0 0.0
    %227 = vmatpush1.msra.mxu0 0.0
    %228 = vmatprep.subr.mxu0 0.0
    %229 = vmatpush1.msra.mxu0 0.0
    %230 = vmatprep.subr.mxu0 0.0
    %231 = vmatpush1.msra.mxu0 0.0
    %232 = vmatprep.subr.mxu0 0.0
    %233 = vmatpush1.msra.mxu0 0.0
    %234 = vmatprep.subr.mxu0 0.0
    %235 = vmatpush1.msra.mxu0 0.0
    %236 = vmatprep.subr.mxu0 0.0
    %237 = vmatpush1.msra.mxu0 0.0
    %238 = vmatprep.subr.mxu0 0.0
    %239 = vmatpush1.msra.mxu0 0.0
    %240 = vmatprep.subr.mxu0 0.0
    %241 = vmatpush1.msra.mxu0 0.0
    %242 = vmatprep.subr.mxu0 0.0
    %243 = vmatpush1.msra.mxu0 0.0
    %244 = vmatprep.subr.mxu0 0.0
    %245 = vmatpush1.msra.mxu0 0.0
    %246 = vmatprep.subr.mxu0 0.0
    %247 = vmatpush1.msra.mxu0 0.0
    %248 = vmatprep.mubr.f32.mxu0 0.0
    %249 = vmatmul.mubr.f32.gmra.mrb[0].mxu0 %v182
    %v250 = vpop.f32.mrb[0].mxu0
    %v251 = vadd.f32 0.0, %v250
    %v252 = vpop.f32.mrb[0].mxu0
    %253 = vdwg.mxu0
    %v255 = vsel %vm147, %v169, 0
    %257 = vmatprep.subr.mxu0 0.0
    %258 = vmatpush1.msra.mxu0 %v170
    %259 = vmatprep.subr.mxu0 0.0
    %260 = vmatpush1.msra.mxu0 %v171
    %261 = vmatprep.subr.mxu0 0.0
    %262 = vmatpush1.msra.mxu0 %v172
    %263 = vmatprep.subr.mxu0 0.0
    %264 = vmatpush1.msra.mxu0 %v173
    %265 = vmatprep.subr.mxu0 0.0
    %266 = vmatpush1.msra.mxu0 %v174
    %267 = vmatprep.subr.mxu0 0.0
    %268 = vmatpush1.msra.mxu0 0.0
    %269 = vmatprep.subr.mxu0 0.0
    %270 = vmatpush1.msra.mxu0 0.0
    %271 = vmatprep.subr.mxu0 0.0
    %272 = vmatpush1.msra.mxu0 0.0
    %273 = vmatprep.subr.mxu0 0.0
    %274 = vmatpush1.msra.mxu0 0.0
    %275 = vmatprep.subr.mxu0 0.0
    %276 = vmatpush1.msra.mxu0 0.0
    %277 = vmatprep.subr.mxu0 0.0
    %278 = vmatpush1.msra.mxu0 0.0
    %279 = vmatprep.subr.mxu0 0.0
    %280 = vmatpush1.msra.mxu0 0.0
    %281 = vmatprep.subr.mxu0 0.0
    %282 = vmatpush1.msra.mxu0 0.0
    %283 = vmatprep.subr.mxu0 0.0
    %284 = vmatpush1.msra.mxu0 0.0
    %285 = vmatprep.subr.mxu0 0.0
    %286 = vmatpush1.msra.mxu0 0.0
    %287 = vmatprep.subr.mxu0 0.0
    %288 = vmatpush1.msra.mxu0 0.0
    %289 = vmatprep.subr.mxu0 0.0
    %290 = vmatpush1.msra.mxu0 0.0
    %291 = vmatprep.subr.mxu0 0.0
    %292 = vmatpush1.msra.mxu0 0.0
    %293 = vmatprep.subr.mxu0 0.0
    %294 = vmatpush1.msra.mxu0 0.0
    %295 = vmatprep.subr.mxu0 0.0
    %296 = vmatpush1.msra.mxu0 0.0
    %297 = vmatprep.subr.mxu0 0.0
    %298 = vmatpush1.msra.mxu0 0.0
    %299 = vmatprep.subr.mxu0 0.0
    %300 = vmatpush1.msra.mxu0 0.0
    %301 = vmatprep.subr.mxu0 0.0
    %302 = vmatpush1.msra.mxu0 0.0
    %303 = vmatprep.subr.mxu0 0.0
    %304 = vmatpush1.msra.mxu0 0.0
    %305 = vmatprep.subr.mxu0 0.0
    %306 = vmatpush1.msra.mxu0 0.0
    %307 = vmatprep.subr.mxu0 0.0
    %308 = vmatpush1.msra.mxu0 0.0
    %309 = vmatprep.subr.mxu0 0.0
    %310 = vmatpush1.msra.mxu0 0.0
    %311 = vmatprep.subr.mxu0 0.0
    %312 = vmatpush1.msra.mxu0 0.0
    %313 = vmatprep.subr.mxu0 0.0
    %314 = vmatpush1.msra.mxu0 0.0
    %315 = vmatprep.subr.mxu0 0.0
    %316 = vmatpush1.msra.mxu0 0.0
    %317 = vmatprep.subr.mxu0 0.0
    %318 = vmatpush1.msra.mxu0 0.0
    %319 = vmatprep.subr.mxu0 0.0
    %320 = vmatpush1.msra.mxu0 0.0
    %321 = vmatprep.mubr.f32.mxu0 0.0
    %322 = vmatmul.mubr.f32.gmra.mrb[0].mxu0 %v255
    %v323 = vpop.f32.mrb[0].mxu0
    %v324 = vadd.f32 %v251, %v323
    %v325 = vpop.f32.mrb[0].mxu0
    %326 = vdwg.mxu0
    %v327 = vld [vmem:[%s3 + $0x1] sm:$0x1]
    %v328 = vadd.f32 %v324, %v327
    %v329 = vmax.f32 %v328, 0.0
    %vm330 = vcmask 253952
    %331 = vst.msk [vmem:[#allocation2] sm:$0x1] %vm330, %v329
    // Predicated region
    $region18: #{model_forward.1} parent=1 // pred_check
      _
    $region19: #{model_forward.1} parent=1 // pred_check_branch
      %333 = sbr.rel (0) target = $region21
    $region20: #{model_forward.1} parent=1 // pred_region
      %s335 = ssub.s32 16, 16
      %336 = vsyncadd [#allocation3], %s335
      %s338 = sshll.u32 [#allocation2], 4
      %s339 = int_to_ptr.vmem [resolvable:$true] %s338
      %341 = dma.vmem_to_hbm [thread:$0]  %s339, 16, %s4, [#allocation3]
    $region21: #{model_forward.1} parent=1 // pred_fallthru
      _
    // Predicated region
    $region22: #{model_forward.1} parent=1 // pred_check
      _
    $region23: #{model_forward.1} parent=1 // pred_check_branch
      %343 = sbr.rel (0) target = $region25
    $region24: #{model_forward.1} parent=1 // pred_region
      %344 = dma.done [#allocation3], 16
    $region25: #{model_forward.1} parent=1 // pred_fallthru
      _
    %345 = vsyncpa [#allocation3], 1

</llo_original>
